<compile_context>
chip_gen: v5e
topology: v5e:2x2
jax: 0.10.0
libtpu: 0.0.40
codegen_flags: <defaults>
</compile_context>

<pallas_src>
import math
import jax
import jax.numpy as jnp
from jax.experimental import pallas as pl
from jax.experimental.pallas import tpu as pltpu

_MIB = 1024 * 1024


def _round_up(x: int, m: int) -> int:
    return ((x + m - 1) // m) * m


def _tpu_vmem_capacity_bytes() -> int:
    """VMEM capacity of the local TPU generation; conservative fallback."""
    try:
        return int(pltpu.get_tpu_info().vmem_capacity_bytes)
    except Exception:
        return 64 * _MIB  # v7x-sized assumption; safe on every generation


def _pick_tile(dim: int, cap: int, align: int) -> int:
    """Largest legal tile <= cap for one dim.

    dim <= cap -> full-dim block (legal under the (8,128) rule, zero padding).
    dim >  cap -> aligned multiple minimizing padded size; ties -> largest tile.
    """
    if dim <= cap:
        return dim
    cap = max(cap, align)
    best_pad, best_t = None, align
    for t in range(align, cap + 1, align):
        padded = _round_up(dim, t)
        if best_pad is None or padded < best_pad or (padded == best_pad and t > best_t):
            best_pad, best_t = padded, t
    return best_t


def _working_set_bytes(tm, tk, tn, in_bytes, out_bytes, with_acc):
    ws = 2 * (tm * tk + tk * tn) * in_bytes   # x / w blocks, double-buffered
    ws += 2 * tm * tn * out_bytes             # output block, double-buffered
    ws += 2 * tn * 4                          # bias block
    if with_acc:
        ws += tm * tn * 4                     # f32 accumulator scratch
    return ws


# ----------------------------------------------------------------------------
# Kernels
# ----------------------------------------------------------------------------
def _linear_kernel_f32_out(x_ref, w_ref, b_ref, o_ref):
    # o_ref (tm, tn) f32 is resident across the K grid axis (its index_map
    # ignores k), so it doubles as the accumulator: write bias once at k == 0,
    # then accumulate MXU partials directly into it. No scratch, no epilogue.
    @pl.when(pl.program_id(2) == 0)
    def _init():
        o_ref[...] = jnp.broadcast_to(b_ref[...], o_ref.shape)

    o_ref[...] += jnp.dot(x_ref[...], w_ref[...],
                          preferred_element_type=jnp.float32)


def _linear_kernel_lowp_out(x_ref, w_ref, b_ref, o_ref, acc_ref):
    # Low-precision output: keep an f32 accumulator scratch, cast once at end.
    k = pl.program_id(2)

    @pl.when(k == 0)
    def _init():
        acc_ref[...] = jnp.zeros_like(acc_ref)

    acc_ref[...] += jnp.dot(x_ref[...], w_ref[...],
                            preferred_element_type=jnp.float32)

    @pl.when(k == pl.num_programs(2) - 1)
    def _finalize():
        o_ref[...] = (acc_ref[...] + b_ref[...]).astype(o_ref.dtype)


# ----------------------------------------------------------------------------
# Wrapper
# ----------------------------------------------------------------------------
def linear_forward(x, w, b, *, use_bf16_inputs: bool = False):
    """y = x @ w + b via a tiled Pallas TPU kernel.

    x: (M, K)   w: (K, N)   b: (N,)
    use_bf16_inputs: cast x/w to bf16 for MXU throughput (helps on v5e/v6e/v7x
                     alike); f32 accumulation kept, ~1e-3 relative numerics.
    """
    M, K = x.shape
    K2, N = w.shape
    assert K == K2, "in_features mismatch"
    out_dtype = x.dtype  # captured before any cast

    # --- generation-aware budgets -------------------------------------------
    vmem_cap = _tpu_vmem_capacity_bytes()
    if vmem_cap >= 128 * _MIB:            # v5e / v6e: 128 MiB VMEM, 1 TensorCore
        tm_cap, tk_cap, tn_cap = 1024, 2048, 1024
        vmem_limit = 100 * _MIB
        num_tc = 1
    else:                                 # v7x: 64 MiB VMEM per core, 2 TCs
        tm_cap, tk_cap, tn_cap = 512, 2048, 512
        vmem_limit = 44 * _MIB
        num_tc = 2

    if use_bf16_inputs:
        x = x.astype(jnp.bfloat16)
        w = w.astype(jnp.bfloat16)
    in_bytes = x.dtype.itemsize
    out_bytes = jnp.dtype(out_dtype).itemsize
    direct_acc = jnp.dtype(out_dtype) == jnp.float32
    m_align = 16 if use_bf16_inputs else 8   # bf16 packs 16 rows / sublane tile

    # --- tile selection ------------------------------------------------------
    tm = _pick_tile(M, tm_cap, m_align)
    tk = _pick_tile(K, tk_cap, 128)
    tn = _pick_tile(N, tn_cap, 128)

    # Defensive shrink (aligned) until the double-buffered working set fits.
    budget = vmem_limit - 8 * _MIB
    while _working_set_bytes(tm, tk, tn, in_bytes, out_bytes, not direct_acc) > budget:
        if tk > 256:
            tk = _pick_tile(K, max(tk // 2, 128), 128)
        elif tn > 128:
            tn = _pick_tile(N, max(tn // 2, 128), 128)
        elif tm > m_align:
            tm = _pick_tile(M, max(tm // 2, m_align), m_align)
        else:
            break

    # v7x: guarantee >=2 blocks on a 'parallel' axis so both TensorCores work.
    if num_tc >= 2 and (-(-M // tm)) * (-(-N // tn)) < 2:
        if N >= 256:
            tn = _pick_tile(N, max(128, tn // 2), 128)
        elif M >= 2 * m_align:
            tm = _pick_tile(M, max(m_align, tm // 2), m_align)

    Mp, Kp, Np = _round_up(M, tm), _round_up(K, tk), _round_up(N, tn)

    # Pad only the dims that actually need it (zeros in K contribute nothing
    # to the dot; padded M/N rows/cols are sliced off after the call).
    xp = x if (Mp == M and Kp == K) else jnp.pad(x, ((0, Mp - M), (0, Kp - K)))
    wp = w if (Kp == K and Np == N) else jnp.pad(w, ((0, Kp - K), (0, Np - N)))
    bp = (b if Np == N else jnp.pad(b, (0, Np - N)))
    bp = bp.reshape(1, Np).astype(jnp.float32)

    grid = (Mp // tm, Np // tn, Kp // tk)
    m_blocks, n_blocks, _ = grid

    # Re-streaming-aware advisory cost estimate (padded shapes, real traffic):
    # x is re-read once per N tile, w once per M tile, output written once.
    cost = pl.CostEstimate(
        flops=2 * Mp * Np * Kp,
        transcendentals=0,
        bytes_accessed=(n_blocks * Mp * Kp * in_bytes
                        + m_blocks * Kp * Np * in_bytes
                        + Mp * Np * out_bytes
                        + m_blocks * Np * 4),
    )

    in_specs = [
        pl.BlockSpec((tm, tk), lambda i, j, k: (i, k)),   # activations
        pl.BlockSpec((tk, tn), lambda i, j, k: (k, j)),   # weights
        pl.BlockSpec((1, tn), lambda i, j, k: (0, j)),    # bias (j only)
    ]
    out_spec = pl.BlockSpec((tm, tn), lambda i, j, k: (i, j))

    if direct_acc:
        kernel = _linear_kernel_f32_out
        scratch = []
    else:
        kernel = _linear_kernel_lowp_out
        scratch = [pltpu.VMEM((tm, tn), jnp.float32)]

    out = pl.pallas_call(
        kernel,
        out_shape=jax.ShapeDtypeStruct((Mp, Np), out_dtype),
        grid_spec=pltpu.PrefetchScalarGridSpec(
            num_scalar_prefetch=0,
            grid=grid,
            in_specs=in_specs,
            out_specs=out_spec,
            scratch_shapes=scratch,
        ),
        compiler_params=pltpu.CompilerParams(
            # M/N output tiles shard across TensorCores; K is the innermost
            # sequential reduction so the resident output block accumulates.
            dimension_semantics=("parallel", "parallel", "arbitrary"),
            vmem_limit_bytes=vmem_limit,
        ),
        cost_estimate=cost,
    )(xp, wp, bp)

    if (Mp, Np) != (M, N):
        out = out[:M, :N]
    return out


def init_linear_params(key, in_features, out_features):
    """Matches reset_parameters(): uniform(-stdv, stdv), stdv = 1/sqrt(out)."""
    stdv = 1.0 / math.sqrt(out_features)
    kw, kb = jax.random.split(key)
    weight = jax.random.uniform(
        kw, (in_features, out_features), minval=-stdv, maxval=stdv,
        dtype=jnp.float32)
    bias = jax.random.uniform(
        kb, (out_features,), minval=-stdv, maxval=stdv, dtype=jnp.float32)
    return weight, bias


if __name__ == "__main__":
    key = jax.random.PRNGKey(0)
    k_in, k_param, k_in2, k_param2 = jax.random.split(key, 4)

    # --- Small shape implied by the module (batch=8, hidden=32) -------------
    # Full-dim blocks -> zero padding, single grid step, no wasted DMA/MXU.
    batch, in_features, out_features = 8, 32, 32
    x = jax.random.normal(k_in, (batch, in_features), dtype=jnp.float32)
    weight, bias = init_linear_params(k_param, in_features, out_features)

    y = jax.block_until_ready(linear_forward(x, weight, bias))
    y_ref = x @ weight + bias
    assert y.shape == (batch, out_features)
    assert jnp.allclose(y, y_ref, atol=1e-5, rtol=1e-5), "mismatch (small)"

    # --- Larger shape: exercises divisor-aware tiling (N=384 no longer padded
    #     to 512) and the v7x >=2-parallel-blocks split path -----------------
    M2, K2, N2 = 256, 1024, 384
    x2 = jax.random.normal(k_in2, (M2, K2), dtype=jnp.float32)
    w2, b2 = init_linear_params(k_param2, K2, N2)

    y2 = jax.block_until_ready(linear_forward(x2, w2, b2))
    y2_ref = x2 @ w2 + b2
    assert y2.shape == (M2, N2)
    assert jnp.allclose(y2, y2_ref, atol=1e-3, rtol=1e-3), "mismatch (tiled)"

    print("KERNEL_OK")
</pallas_src>

<mosaic_0001>
module attributes {stable_mosaic.version = 11 : i64} {
  func.func @_linear_kernel_f32_out(%arg0: i32, %arg1: i32, %arg2: i32, %arg3: memref<8x32xf32, #tpu.memory_space<vmem>>, %arg4: memref<32x32xf32, #tpu.memory_space<vmem>>, %arg5: memref<1x32xf32, #tpu.memory_space<vmem>>, %arg6: memref<8x32xf32, #tpu.memory_space<vmem>>) attributes {dimension_semantics = [#tpu.dimension_semantics<parallel>, #tpu.dimension_semantics<parallel>, #tpu.dimension_semantics<arbitrary>], iteration_bounds = array<i64: 1, 1, 1>, scalar_prefetch = 0 : i64, scratch_operands = 0 : i64, tpu.core_type = #tpu.core_type<tc>, window_params = [{transform_indices = @transform_0, window_bounds = array<i64: 8, 32>}, {transform_indices = @transform_1, window_bounds = array<i64: 32, 32>}, {transform_indices = @transform_2, window_bounds = array<i64: 1, 32>}, {transform_indices = @transform_3, window_bounds = array<i64: 8, 32>}]} {
    %c0_i32 = arith.constant 0 : i32
    %0 = arith.cmpi eq, %arg2, %c0_i32 : i32
    %1 = arith.extui %0 : i1 to i32
    %c0_i32_0 = arith.constant 0 : i32
    %2 = arith.cmpi ne, %1, %c0_i32_0 : i32
    scf.if %2 {
      %c0_8 = arith.constant 0 : index
      %c0_9 = arith.constant 0 : index
      %9 = vector.load %arg5[%c0_8, %c0_9] : memref<1x32xf32, #tpu.memory_space<vmem>>, vector<1x32xf32>
      %10 = vector.shape_cast %9 : vector<1x32xf32> to vector<1x32xf32>
      %11 = vector.broadcast %10 : vector<1x32xf32> to vector<8x32xf32>
      %c0_10 = arith.constant 0 : index
      %c0_11 = arith.constant 0 : index
      %12 = vector.load %arg6[%c0_10, %c0_11] : memref<8x32xf32, #tpu.memory_space<vmem>>, vector<8x32xf32>
      tpu.vector_store %arg6[%c0_10, %c0_11], %11 {strides = array<i32>} : memref<8x32xf32, #tpu.memory_space<vmem>>, vector<8x32xf32>,
    } else {
    }
    %c0 = arith.constant 0 : index
    %c0_1 = arith.constant 0 : index
    %3 = vector.load %arg6[%c0, %c0_1] : memref<8x32xf32, #tpu.memory_space<vmem>>, vector<8x32xf32>
    %c0_2 = arith.constant 0 : index
    %c0_3 = arith.constant 0 : index
    %4 = vector.load %arg3[%c0_2, %c0_3] : memref<8x32xf32, #tpu.memory_space<vmem>>, vector<8x32xf32>
    %c0_4 = arith.constant 0 : index
    %c0_5 = arith.constant 0 : index
    %5 = vector.load %arg4[%c0_4, %c0_5] : memref<32x32xf32, #tpu.memory_space<vmem>>, vector<32x32xf32>
    %cst = arith.constant dense<0.000000e+00> : vector<8x32xf32>
    %6 = tpu.matmul %4, %5, %cst {dimension_numbers = #tpu.dot_dimension_numbers<[1], [0], [0], [1], [0, 0, 1, 1], [], []>} : vector<8x32xf32>, vector<32x32xf32>, vector<8x32xf32> -> vector<8x32xf32>
    %7 = arith.addf %3, %6 : vector<8x32xf32>
    %c0_6 = arith.constant 0 : index
    %c0_7 = arith.constant 0 : index
    %8 = vector.load %arg6[%c0_6, %c0_7] : memref<8x32xf32, #tpu.memory_space<vmem>>, vector<8x32xf32>
    tpu.vector_store %arg6[%c0_6, %c0_7], %7 {strides = array<i32>} : memref<8x32xf32, #tpu.memory_space<vmem>>, vector<8x32xf32>,
    return
  }
  func.func @transform_0(%arg0: i32, %arg1: i32, %arg2: i32) -> (i32, i32) {
    %c0_i32 = arith.constant 0 : i32
    return %arg0, %arg2 : i32, i32
  }
  func.func @transform_1(%arg0: i32, %arg1: i32, %arg2: i32) -> (i32, i32) {
    %c0_i32 = arith.constant 0 : i32
    return %arg2, %arg1 : i32, i32
  }
  func.func @transform_2(%arg0: i32, %arg1: i32, %arg2: i32) -> (i32, i32) {
    %c0_i32 = arith.constant 0 : i32
    %c0_i32_0 = arith.constant 0 : i32
    return %c0_i32, %arg1 : i32, i32
  }
  func.func @transform_3(%arg0: i32, %arg1: i32, %arg2: i32) -> (i32, i32) {
    %c0_i32 = arith.constant 0 : i32
    return %arg0, %arg1 : i32, i32
  }
}

</mosaic_0001>

<llo_original>
// kernel: tpu_custom_call.1
$region0: #{tpu_custom_call.1}
  #allocation0 [shape = 'u32[]', space=smem, size = 0x4, offset = 0x4, fixed_abs, tag = 'smem constant byte address 0x4 - core index']
  #allocation1 [shape = 'u32[72,128]{1,0:T(1,128)}', space=vmem, size = 0x9000, scoped, tag = 'internal scratch']
  %s0 = inlined_call_operand.hbm [shape: f32[8,32], index: 0, kind: input, shape index: {}]
  %s1 = inlined_call_operand.hbm [shape: f32[32,32], index: 1, kind: input, shape index: {}]
  %s2 = inlined_call_operand.vmem [shape: f32[1,32], index: 2, kind: input, shape index: {}]
  %s3 = inlined_call_operand.hbm [shape: f32[8,32], index: 3, kind: output, shape index: {}]
  %s4 = sld [smem:[#allocation0]]
  $region34: #{tpu_custom_call.1} parent=0
    _
  %s6 = ssub.s32 1, %s4
  %s7 = scalar_select 0, %s6, %s4
  $region1: #{tpu_custom_call.1} parent=0
    #allocation2 [shape = 'u8[4096]{0}', space=vmem, size = 0x1000, scoped, tag = 'input window, operand 0, single buffered']
    #allocation3 [shape = 's32[1]{0}', space=sflag, size = 0x4, scoped, tag = 'scoped memory for tpu_custom_call.1']
    #allocation4 [shape = 's32[1]{0}', space=sflag, size = 0x4, scoped, tag = 'scoped memory for tpu_custom_call.1']
    #allocation5 [shape = 'u8[16384]{0}', space=vmem, size = 0x4000, scoped, tag = 'input window, operand 1, single buffered']
    #allocation6 [shape = 's32[1]{0}', space=sflag, size = 0x4, scoped, tag = 'scoped memory for tpu_custom_call.1']
    #allocation7 [shape = 'u8[4096]{0}', space=vmem, size = 0x1000, scoped, tag = 'output window, operand 0, single buffered']
    %8 = vsyncpa [#allocation3], 0
    %9 = vsyncpa [#allocation6], 0
    %10 = vsyncpa [#allocation4], 0
    // Predicated region
    $region2: #{tpu_custom_call.1} parent=1 // pred_check
      _
    $region3: #{tpu_custom_call.1} parent=1 // pred_check_branch
      %12 = sbr.rel (0) target = $region5
    $region4: #{tpu_custom_call.1} parent=1 // pred_region
      %14 = vsyncadd [#allocation3], 0
      %s16 = sshll.u32 %s0, 4
      %s17 = int_to_ptr.hbm [resolvable:$true] %s16
      %s18 = sshll.u32 [#allocation2], 4
      %s19 = int_to_ptr.vmem [resolvable:$true] %s18
      %21 = dma.hbm_to_vmem [thread:$0]  %s17, 128, %s19, [#allocation3]
    $region5: #{tpu_custom_call.1} parent=1 // pred_fallthru
      _
    // Predicated region
    $region6: #{tpu_custom_call.1} parent=1 // pred_check
      _
    $region7: #{tpu_custom_call.1} parent=1 // pred_check_branch
      %23 = sbr.rel (0) target = $region9
    $region8: #{tpu_custom_call.1} parent=1 // pred_region
      %25 = vsyncadd [#allocation6], 0
      %s26 = sshll.u32 %s1, 4
      %s27 = int_to_ptr.hbm [resolvable:$true] %s26
      %s28 = sshll.u32 [#allocation5], 4
      %s29 = int_to_ptr.vmem [resolvable:$true] %s28
      %34 = dma.hbm_to_vmem [thread:$0]  %s27, 512, %s29, [#allocation6], 128, 128, 8
    $region9: #{tpu_custom_call.1} parent=1 // pred_fallthru
      _
    // Predicated region
    $region10: #{tpu_custom_call.1} parent=1 // pred_check
      _
    $region11: #{tpu_custom_call.1} parent=1 // pred_check_branch
      %36 = sbr.rel (0) target = $region13
    $region12: #{tpu_custom_call.1} parent=1 // pred_region
      _
    $region13: #{tpu_custom_call.1} parent=1 // pred_fallthru
      _
    // Predicated region
    $region14: #{tpu_custom_call.1} parent=1 // pred_check
      _
    $region15: #{tpu_custom_call.1} parent=1 // pred_check_branch
      %38 = sbr.rel (0) target = $region17
    $region16: #{tpu_custom_call.1} parent=1 // pred_region
      %40 = dma.done [#allocation3], 128
    $region17: #{tpu_custom_call.1} parent=1 // pred_fallthru
      _
    // Predicated region
    $region18: #{tpu_custom_call.1} parent=1 // pred_check
      _
    $region19: #{tpu_custom_call.1} parent=1 // pred_check_branch
      %42 = sbr.rel (0) target = $region21
    $region20: #{tpu_custom_call.1} parent=1 // pred_region
      %44 = dma.done [#allocation6], 512
    $region21: #{tpu_custom_call.1} parent=1 // pred_fallthru
      _
    %p45 = scmp.eq.s32.totalorder 0, 0
    // Predicated region
    $region22: #{tpu_custom_call.1} parent=1 // pred_check
      %p46 = pneg %p45
    $region23: #{tpu_custom_call.1} parent=1 // pred_check_branch
      %48 = sbr.rel (%p46) target = $region25
    $region24: #{tpu_custom_call.1} parent=1 // pred_region
      %v49 = vld [vmem:[%s2] sm:$0x1]
      %v51 = vperm.slane %v49, 0
      %vm53 = vcmask 261120
      %54 = vst.msk [vmem:[#allocation7] sm:$0xff] %vm53, %v51
    $region25: #{tpu_custom_call.1} parent=1 // pred_fallthru
      _
    %v55 = vld [vmem:[#allocation7] sm:$0xff]
    %v56 = vld [vmem:[#allocation2] sm:$0xff]
    %v57 = vld [vmem:[#allocation5] sm:$0xff]
    %v58 = vld [vmem:[#allocation5 + $0x8] sm:$0xff]
    %v59 = vld [vmem:[#allocation5 + $0x10] sm:$0xff]
    %v60 = vld [vmem:[#allocation5 + $0x18] sm:$0xff]
    %vm61 = vcmask 261120
    %v63 = vsel %vm61, %v56, 0
    %65 = vmatpush.msra.mxu0 0.0
    %66 = vmatpush.msra.mxu0 0.0
    %67 = vmatpush.msra.mxu0 0.0
    %68 = vmatpush.msra.mxu0 0.0
    %69 = vmatpush.msra.mxu0 0.0
    %70 = vmatpush.msra.mxu0 0.0
    %71 = vmatpush.msra.mxu0 0.0
    %72 = vmatpush.msra.mxu0 0.0
    %73 = vmatpush.msra.mxu0 0.0
    %74 = vmatpush.msra.mxu0 0.0
    %75 = vmatpush.msra.mxu0 0.0
    %76 = vmatpush.msra.mxu0 0.0
    %77 = vmatpush.msra.mxu0 %v60
    %78 = vmatpush.msra.mxu0 %v59
    %79 = vmatpush.msra.mxu0 %v58
    %80 = vmatpush.msra.mxu0 %v57
    %81 = vmatmul.f32.gmra.mxu0 %v63
    %v82 = vpop.f32.mrf.mxu0
    %v83 = vadd.f32 0.0, %v82
    %84 = vdwg.mxu0
    %v85 = vadd.f32 %v55, %v83
    %86 = vst.msk [vmem:[#allocation7] sm:$0xff] %vm61, %v85
    // Predicated region
    $region26: #{tpu_custom_call.1} parent=1 // pred_check
      _
    $region27: #{tpu_custom_call.1} parent=1 // pred_check_branch
      %88 = sbr.rel (0) target = $region29
    $region28: #{tpu_custom_call.1} parent=1 // pred_region
      %90 = vsyncadd [#allocation4], 0
      %s92 = sshll.u32 [#allocation7], 4
      %s93 = int_to_ptr.vmem [resolvable:$true] %s92
      %s94 = sshll.u32 %s3, 4
      %s95 = int_to_ptr.hbm [resolvable:$true] %s94
      %97 = dma.vmem_to_hbm [thread:$0]  %s93, 128, %s95, [#allocation4]
    $region29: #{tpu_custom_call.1} parent=1 // pred_fallthru
      _
    // Predicated region
    $region30: #{tpu_custom_call.1} parent=1 // pred_check
      _
    $region31: #{tpu_custom_call.1} parent=1 // pred_check_branch
      %99 = sbr.rel (0) target = $region33
    $region32: #{tpu_custom_call.1} parent=1 // pred_region
      %101 = dma.done [#allocation4], 128
    $region33: #{tpu_custom_call.1} parent=1 // pred_fallthru
      _
    %102 = vsyncpa [#allocation3], 1
    %103 = vsyncpa [#allocation6], 1
    %104 = vsyncpa [#allocation4], 1

</llo_original>
